<compile_context>
chip_gen: v5e
topology: v5e:2x2
jax: 0.10.0
libtpu: 0.0.40
codegen_flags: <defaults>
</compile_context>

<pallas_src>
import functools

import jax
import jax.numpy as jnp
from jax.experimental import pallas as pl
from jax.experimental.pallas import tpu as pltpu


# ----------------------------------------------------------------------------
# Hardware probes: VMEM capacity, chip generation, single-buffer support
# ----------------------------------------------------------------------------
_VMEM_CAP = None


def _vmem_capacity_bytes():
    """Physical VMEM per TensorCore; conservative 64 MiB fallback."""
    global _VMEM_CAP
    if _VMEM_CAP is None:
        try:
            _VMEM_CAP = int(pltpu.get_tpu_info().vmem_capacity_bytes)
        except Exception:
            _VMEM_CAP = 64 * 1024 * 1024
    return _VMEM_CAP


def _vmem_limit_bytes():
    # ~7/8 of physical leaves headroom for Mosaic internal scratch.
    return _vmem_capacity_bytes() * 7 // 8


def _small_vmem():
    # v7x has 64 MiB / TC; v5e / v6e have 128 MiB.
    return _vmem_capacity_bytes() <= 96 * 1024 * 1024


_DEVICE_KIND = None


def _device_kind():
    global _DEVICE_KIND
    if _DEVICE_KIND is None:
        try:
            _DEVICE_KIND = jax.devices()[0].device_kind.lower()
        except Exception:
            _DEVICE_KIND = ""
    return _DEVICE_KIND


def _has_bf16_vector_units():
    # v4/v5-class chips have no bf16 VPU/EUP -- a bf16 softmax only adds casts there.
    k = _device_kind()
    return not ("v4" in k or "v5" in k)


def _cparams(dims):
    return pltpu.CompilerParams(dimension_semantics=dims,
                                vmem_limit_bytes=_vmem_limit_bytes())


def _copy_probe_kernel(x_ref, o_ref):
    o_ref[...] = x_ref[...]


_SINGLE_BUFFER_OK = None


def _single_buffer_ok():
    """Probe whether this JAX/Mosaic supports single-buffering via pl.Buffered(1)."""
    global _SINGLE_BUFFER_OK
    if _SINGLE_BUFFER_OK is None:
        try:
            out = pl.pallas_call(
                _copy_probe_kernel,
                out_shape=jax.ShapeDtypeStruct((8, 128), jnp.float32),
                grid=(2,),
                in_specs=[pl.BlockSpec((8, 128), lambda i: (0, 0),
                                       pipeline_mode=pl.Buffered(buffer_count=1))],
                out_specs=pl.BlockSpec((8, 128), lambda i: (0, 0)),
            )(jnp.zeros((8, 128), jnp.float32))
            jax.block_until_ready(out)
            _SINGLE_BUFFER_OK = True
        except Exception:
            _SINGLE_BUFFER_OK = False
    return _SINGLE_BUFFER_OK


def _const_spec(shape):
    """BlockSpec for an operand whose block never changes across the grid
    (small weights / biases / mask): constant index_map + single buffering when
    available (no re-DMA either way)."""
    idx = lambda *_: (0,) * len(shape)
    if _single_buffer_ok():
        return pl.BlockSpec(shape, idx, pipeline_mode=pl.Buffered(buffer_count=1))
    return pl.BlockSpec(shape, idx)


# ----------------------------------------------------------------------------
# Tiling helpers
# ----------------------------------------------------------------------------
def _seq_tile(S, small_vmem):
    """Sequence tile: keep the whole sequence resident on 128 MiB chips (no extra
    weight re-streaming); split to <=1024-row tiles on 64 MiB chips (also feeds
    both v7x TensorCores when N is 1 or odd)."""
    cap = 1024 if small_vmem else 4096
    if S <= cap:
        return S
    best = 0
    for d in range(8, cap + 1, 8):
        if S % d == 0:
            best = d
    return best if best >= 128 else S


def _col_tile(total, cap):
    """Largest divisor of `total` that is a multiple of 128 and <= cap, else total."""
    best = 0
    d = 128
    while d <= min(total, cap):
        if total % d == 0:
            best = d
        d += 128
    return best if best else total


# ----------------------------------------------------------------------------
# Elementwise helpers used inside kernels (always f32 math)
# ----------------------------------------------------------------------------
def _layernorm_f32(x, w, b, eps):
    mu = jnp.mean(x, axis=-1, keepdims=True)
    var = jnp.mean(jnp.square(x - mu), axis=-1, keepdims=True)
    return (x - mu) * jax.lax.rsqrt(var + eps) * w + b


def _gelu_erf(x):
    # PyTorch nn.GELU() default is the exact erf GELU.
    # TODO(synk): Mosaic has no native erf; Abramowitz & Stegun 7.1.26 polynomial
    # (+ EUP approx reciprocal) -- error well below the bf16 matmul noise floor.
    z = x * 0.7071067811865476
    az = jnp.abs(z)
    t = pl.reciprocal(1.0 + 0.3275911 * az, approx=True)
    poly = ((((1.061405429 * t - 1.453152027) * t + 1.421413741) * t
             - 0.284496736) * t + 0.254829592) * t
    erf_abs = 1.0 - poly * jnp.exp(-az * az)
    erf = jnp.where(z >= 0, erf_abs, -erf_abs)
    return 0.5 * x * (1.0 + erf)


# ----------------------------------------------------------------------------
# Patch-embedding matmul (row-tiled) and standalone LayerNorm (tiled over N, S)
# ----------------------------------------------------------------------------
def _rowmm_kernel(a_ref, b_ref, o_ref):
    o_ref[...] = jnp.dot(a_ref[...], b_ref[...],
                         preferred_element_type=jnp.float32).astype(o_ref.dtype)


def pallas_patch_matmul(patches_bf16, w_bf16):
    R, K = patches_bf16.shape
    D = w_bf16.shape[1]
    Rp = ((R + 7) // 8) * 8
    if Rp != R:
        patches_bf16 = jnp.pad(patches_bf16, ((0, Rp - R), (0, 0)))
    tm = 8
    # Candidates include 1600/800/640/320 so the real-size grid (Rp = N*1600)
    # uses a few large MXU steps instead of many overhead-sized ones.
    for cand in (2048, 1600, 1280, 1024, 800, 640, 512, 320, 256, 128, 64, 32, 16, 8):
        if Rp % cand == 0:
            tm = cand
            break
    out = pl.pallas_call(
        _rowmm_kernel,
        out_shape=jax.ShapeDtypeStruct((Rp, D), jnp.float32),
        grid=(Rp // tm,),
        in_specs=[pl.BlockSpec((tm, K), lambda i: (i, 0)),
                  _const_spec((K, D))],
        out_specs=pl.BlockSpec((tm, D), lambda i: (i, 0)),
        compiler_params=_cparams(("parallel",)),
    )(patches_bf16, w_bf16)
    return out[:R]


def _layernorm_kernel(x_ref, w_ref, b_ref, o_ref, *, eps):
    x = x_ref[0].astype(jnp.float32)
    o_ref[0] = _layernorm_f32(x, w_ref[...], b_ref[...], eps).astype(o_ref.dtype)


def pallas_layernorm(x, w, b, eps):
    N, S, D = x.shape
    tS = _seq_tile(S, _small_vmem())
    return pl.pallas_call(
        functools.partial(_layernorm_kernel, eps=float(eps)),
        out_shape=jax.ShapeDtypeStruct(x.shape, x.dtype),
        grid=(N, S // tS),
        in_specs=[pl.BlockSpec((1, tS, D), lambda i, si: (i, si, 0)),
                  _const_spec((1, D)), _const_spec((1, D))],
        out_specs=pl.BlockSpec((1, tS, D), lambda i, si: (i, si, 0)),
        compiler_params=_cparams(("parallel", "parallel")),
    )(x, w.reshape(1, D), b.reshape(1, D))


# ----------------------------------------------------------------------------
# Encoder-block kernels
# ----------------------------------------------------------------------------
def _ln_qkv_kernel(x_ref, lnw_ref, lnb_ref, wqkv_ref, o_ref, xn_scr, *, eps):
    j = pl.program_id(2)

    @pl.when(j == 0)
    def _():
        xn = _layernorm_f32(x_ref[0].astype(jnp.float32),
                            lnw_ref[...], lnb_ref[...], eps)
        xn_scr[...] = xn.astype(jnp.bfloat16)

    o_ref[0] = jnp.dot(xn_scr[...], wqkv_ref[...],
                       preferred_element_type=jnp.float32).astype(o_ref.dtype)


def _attn_core_kernel(q_ref, kt_ref, v_ref, mask_ref, o_ref, *, use_bf16):
    # 1/sqrt(head_dim) is already folded into the Q columns of wqkv.
    q = q_ref[0]                                    # (S, hd) bf16
    s = jnp.dot(q, kt_ref[0], preferred_element_type=jnp.float32)   # (S, S) f32
    s = s + mask_ref[0]                             # (1, S) additive key mask
    m = jnp.max(s, axis=-1, keepdims=True)
    t = s - m
    if use_bf16:
        e = jnp.exp(t.astype(jnp.bfloat16))         # bf16 EUP (2x packing)
    else:
        e = jnp.exp(t)                              # f32 on v5-class chips
    # f32 row sums; normalize AFTER the PV matmul (no (S,S) multiply pass).
    r = jnp.sum(e.astype(jnp.float32), axis=-1, keepdims=True)
    ctx = jnp.dot(e.astype(jnp.bfloat16), v_ref[0],
                  preferred_element_type=jnp.float32)                # (S, hd)
    o_ref[0] = (ctx * pl.reciprocal(r, approx=True)).astype(o_ref.dtype)


def _attn_out_kernel(ctx_ref, x_ref, wo_ref, gate_ref, o_ref, acc_ref):
    # Fused head-merge: accumulate ctx_h @ wo_h over the head grid axis.
    # TODO(synk): the per-head contraction dim (hd) under-packs the MXU K axis;
    # the win here is removing the (N,H,S,hd)->(N,S,D) HBM transpose.
    h = pl.program_id(2)

    @pl.when(h == 0)
    def _():
        acc_ref[...] = jnp.zeros_like(acc_ref)

    acc_ref[...] += jnp.dot(ctx_ref[0], wo_ref[...],
                            preferred_element_type=jnp.float32)

    @pl.when(h == pl.num_programs(2) - 1)
    def _():
        o_ref[0] = (x_ref[0].astype(jnp.float32)
                    + gate_ref[0] * acc_ref[...]).astype(o_ref.dtype)


def _ffn_kernel(x_ref, lnw_ref, lnb_ref, w1_ref, b1_ref, w2_ref, b2_ref, gate_ref,
                o_ref, xn_scr, acc_scr, *, eps):
    kt = pl.program_id(2)

    @pl.when(kt == 0)
    def _():
        xn = _layernorm_f32(x_ref[0].astype(jnp.float32),
                            lnw_ref[...], lnb_ref[...], eps)
        xn_scr[...] = xn.astype(jnp.bfloat16)
        acc_scr[...] = jnp.zeros_like(acc_scr)

    h = jnp.dot(xn_scr[...], w1_ref[...],
                preferred_element_type=jnp.float32) + b1_ref[...]
    h = _gelu_erf(h).astype(jnp.bfloat16)
    acc_scr[...] += jnp.dot(h, w2_ref[...], preferred_element_type=jnp.float32)

    @pl.when(kt == pl.num_programs(2) - 1)
    def _():
        ffn = acc_scr[...] + b2_ref[...]
        o_ref[0] = (x_ref[0].astype(jnp.float32) + gate_ref[0] * ffn).astype(o_ref.dtype)


def pallas_encoder_block(x, mask, lp, cfg, gated):
    N, S, D = x.shape
    H = cfg['vision_num_heads']
    hd = D // H
    Hd = cfg['vision_hidden_dim']
    eps = float(cfg['norm_eps'])

    small_vmem = _small_vmem()
    use_bf16_softmax = _has_bf16_vector_units()

    tS = _seq_tile(S, small_vmem)
    nS = S // tS
    threeD = 3 * D
    tN = _col_tile(threeD, max(D, 128))          # QKV output-column tile
    nJ = threeD // tN
    tHd = _col_tile(Hd, 512 if small_vmem else 1024)   # FFN hidden tile
    nK = Hd // tHd

    if gated:
        g_attn = jnp.tanh(lp['gate_attn']).reshape(1).astype(jnp.float32)
        g_ffn = jnp.tanh(lp['gate_ffn']).reshape(1).astype(jnp.float32)
    else:
        g_attn = jnp.ones((1,), jnp.float32)
        g_ffn = jnp.ones((1,), jnp.float32)

    # Fold the 1/sqrt(head_dim) attention scale into the Q columns of wqkv
    # (trace-time XLA op; removes an (S,S) f32 scaling pass per head-step).
    scale = 1.0 / float(hd) ** 0.5
    wq_scaled = (lp['wqkv'][:, :D].astype(jnp.float32) * scale).astype(jnp.bfloat16)
    wqkv = jnp.concatenate([wq_scaled, lp['wqkv'][:, D:]], axis=1)

    # (1) LN1 + fused QKV projection, tiled over (tile, seq-tile, out-column-tile).
    qkv = pl.pallas_call(
        functools.partial(_ln_qkv_kernel, eps=eps),
        out_shape=jax.ShapeDtypeStruct((N, S, threeD), jnp.bfloat16),
        grid=(N, nS, nJ),
        in_specs=[pl.BlockSpec((1, tS, D), lambda n, si, j: (n, si, 0)),
                  _const_spec((1, D)), _const_spec((1, D)),
                  pl.BlockSpec((D, tN), lambda n, si, j: (0, j))],
        out_specs=pl.BlockSpec((1, tS, tN), lambda n, si, j: (n, si, j)),
        scratch_shapes=[pltpu.VMEM((tS, D), jnp.bfloat16)],
        compiler_params=_cparams(("parallel", "parallel", "arbitrary")),
    )(x, lp['ln1_w'].reshape(1, D), lp['ln1_b'].reshape(1, D), wqkv)

    # (2) head-major split (pure XLA layout plumbing); K emitted pre-transposed
    # (hd, S) so the score matmul needs no in-kernel XLU transpose.
    # TODO(synk): emitting head-major QKV directly from the kernel would remove
    # this HBM transpose, but the hd lane misalignment makes it a net loss today.
    qkv = qkv.reshape(N, S, 3, H, hd)
    q = qkv[:, :, 0].transpose(0, 2, 1, 3).reshape(N * H, S, hd)
    k_t = qkv[:, :, 1].transpose(0, 2, 3, 1).reshape(N * H, hd, S)
    v = qkv[:, :, 2].transpose(0, 2, 1, 3).reshape(N * H, S, hd)

    # (3) attention core: one (tile, head) per step, post-PV normalization.
    ctx = pl.pallas_call(
        functools.partial(_attn_core_kernel, use_bf16=use_bf16_softmax),
        out_shape=jax.ShapeDtypeStruct((N * H, S, hd), jnp.bfloat16),
        grid=(N * H,),
        in_specs=[pl.BlockSpec((1, S, hd), lambda i: (i, 0, 0)),
                  pl.BlockSpec((1, hd, S), lambda i: (i, 0, 0)),
                  pl.BlockSpec((1, S, hd), lambda i: (i, 0, 0)),
                  _const_spec((1, 1, S))],
        out_specs=pl.BlockSpec((1, S, hd), lambda i: (i, 0, 0)),
        compiler_params=_cparams(("parallel",)),
    )(q, k_t, v, mask)

    # (4) output projection with fused head-merge + gate + residual (no HBM
    # head-merge transpose): accumulate ctx_h @ wo_h over the head axis.
    skipped = pl.pallas_call(
        _attn_out_kernel,
        out_shape=jax.ShapeDtypeStruct((N, S, D), x.dtype),
        grid=(N, nS, H),
        in_specs=[pl.BlockSpec((1, tS, hd), lambda n, si, h: (n * H + h, si, 0)),
                  pl.BlockSpec((1, tS, D), lambda n, si, h: (n, si, 0)),
                  pl.BlockSpec((hd, D), lambda n, si, h: (h, 0)),
                  pl.BlockSpec(memory_space=pltpu.MemorySpace.SMEM)],
        out_specs=pl.BlockSpec((1, tS, D), lambda n, si, h: (n, si, 0)),
        scratch_shapes=[pltpu.VMEM((tS, D), jnp.float32)],
        compiler_params=_cparams(("parallel", "parallel", "arbitrary")),
    )(ctx, x, lp['wo'], g_attn)

    # (5) LN2 + FFN tiled over (tile, seq-tile, hidden-tile) with a resident f32
    # accumulator; w1/w2 streamed in (D,tHd)/(tHd,D) blocks.
    out = pl.pallas_call(
        functools.partial(_ffn_kernel, eps=eps),
        out_shape=jax.ShapeDtypeStruct((N, S, D), x.dtype),
        grid=(N, nS, nK),
        in_specs=[pl.BlockSpec((1, tS, D), lambda n, si, kt: (n, si, 0)),
                  _const_spec((1, D)), _const_spec((1, D)),
                  pl.BlockSpec((D, tHd), lambda n, si, kt: (0, kt)),
                  pl.BlockSpec((1, tHd), lambda n, si, kt: (0, kt)),
                  pl.BlockSpec((tHd, D), lambda n, si, kt: (kt, 0)),
                  _const_spec((1, D)),
                  pl.BlockSpec(memory_space=pltpu.MemorySpace.SMEM)],
        out_specs=pl.BlockSpec((1, tS, D), lambda n, si, kt: (n, si, 0)),
        scratch_shapes=[pltpu.VMEM((tS, D), jnp.bfloat16),
                        pltpu.VMEM((tS, D), jnp.float32)],
        compiler_params=_cparams(("parallel", "parallel", "arbitrary")),
    )(skipped, lp['ln2_w'].reshape(1, D), lp['ln2_b'].reshape(1, D),
      lp['w1'], lp['b1'].reshape(1, Hd), lp['w2'], lp['b2'].reshape(1, D), g_ffn)
    return out


# ----------------------------------------------------------------------------
# JAX glue: positional / tile embeddings (HF Mllama semantics)
# ----------------------------------------------------------------------------
def apply_tile_pos_emb(hidden, ar_ids, pe, BM, T, P, D):
    emb = pe['emb'][ar_ids.reshape(-1)]                     # (BM, T*D)
    emb = emb.reshape(BM, T, 1, D) * jnp.tanh(pe['gate'])
    h = hidden.reshape(BM, T, P, D) + emb
    return h.reshape(BM * T, P, D)


def apply_gated_pos_emb(hidden, ar_ids, pe, BM, T, P, D):
    g = jnp.tanh(pe['gate'])
    h = hidden + (1.0 - g) * pe['emb'][None]                # (BMT, P, D)
    tile = pe['tile_emb'][ar_ids.reshape(-1)].reshape(BM, T, P, D) * g
    h = h.reshape(BM, T, P, D) + tile
    return h.reshape(BM * T, P, D)


# ----------------------------------------------------------------------------
# Full forward
# ----------------------------------------------------------------------------
def mllama3_vision_forward(params, pixel_values, aspect_ratio_ids,
                           aspect_ratio_mask, cfg):
    B, M, T, C, H, W = pixel_values.shape
    D = cfg['vision_embed_dim']
    p = cfg['patch_size']
    eps = cfg['norm_eps']
    N = B * M * T
    BM = B * M

    # ---- patch embedding: stride==kernel Conv2d -> patch extract + row-tiled matmul
    x = pixel_values.reshape(N, C, H, W)
    gh, gw = H // p, W // p
    patches = (x.reshape(N, C, gh, p, gw, p)
                .transpose(0, 2, 4, 1, 3, 5)
                .reshape(N * gh * gw, C * p * p)).astype(jnp.bfloat16)
    patch_embeds = pallas_patch_matmul(patches, params['patch_w'])   # (N*gh*gw, D) f32
    hidden = patch_embeds.reshape(N, gh * gw, D)
    num_patches = gh * gw

    # ---- pre-tile positional embedding
    hidden = apply_tile_pos_emb(hidden, aspect_ratio_ids, params['pre_tile'],
                                BM, T, num_patches, D)

    # ---- class token
    cls = jnp.broadcast_to(params['class_emb'][None, None, :], (N, 1, D))
    hidden = jnp.concatenate([cls, hidden], axis=1)
    num_patches += 1

    # ---- gated positional embedding
    hidden = apply_gated_pos_emb(hidden, aspect_ratio_ids, params['gated_pos'],
                                 BM, T, num_patches, D)

    # ---- pre-encoder LayerNorm (Pallas, tiled)
    hidden = pallas_layernorm(hidden, params['norm1_w'], params['norm1_b'], eps)

    # ---- pad sequence to a multiple of 8
    pad = (8 - hidden.shape[-2] % 8) % 8
    hidden = jnp.pad(hidden, ((0, 0), (0, pad), (0, 0)))
    S = num_patches + pad

    # ---- attention mask: mask padded key positions (additive bias, one (1,1,S)
    # block shared by every grid step).
    # TODO(synk): _prepare_aspect_ratio_attention_mask is not provided in the
    # reference (and its target_length argument is buggy); tile-level aspect
    # ratio masking is omitted, only padding patches are masked.
    key_valid = jnp.arange(S) < num_patches
    mask = jnp.where(key_valid, 0.0, -1e9).astype(jnp.float32).reshape(1, 1, S)

    # ---- local encoder (non-gated blocks)
    intermediates = []
    for lp in params['encoder_layers']:
        hidden = pallas_encoder_block(hidden, mask, lp, cfg, gated=False)
        intermediates.append(hidden)

    # ---- post-encoder LayerNorm (Pallas)
    hidden = pallas_layernorm(hidden, params['norm2_w'], params['norm2_b'], eps)

    # ---- post-tile positional embedding
    hidden = apply_tile_pos_emb(hidden, aspect_ratio_ids, params['post_tile'],
                                BM, T, S, D)

    # ---- global transformer (gated blocks)
    for lp in params['global_layers']:
        hidden = pallas_encoder_block(hidden, mask, lp, cfg, gated=True)

    # ---- strip padded patches, final reshape
    hidden = hidden.reshape(BM, T, S, D)[:, :, :num_patches]
    hidden = hidden.reshape(B, M * T, num_patches, D)

    inter = jnp.stack([intermediates[i] for i in cfg['intermediate_layers_indices']],
                      axis=-1)                                   # (N, S, D, n_int)
    inter = inter.reshape(N, S, -1)
    inter = inter.reshape(BM, T, S, -1)[:, :, :num_patches]
    inter = inter.reshape(B, M * T, num_patches, -1)

    return jnp.concatenate([hidden, inter], axis=-1)


# ----------------------------------------------------------------------------
# Deterministic parameter init (matmul weights stored in bf16, rest in f32)
# ----------------------------------------------------------------------------
def init_params(key, cfg):
    D = cfg['vision_embed_dim']
    Hd = cfg['vision_hidden_dim']
    T = cfg['max_num_tiles']
    C = cfg['num_channels']
    p = cfg['patch_size']
    P = (cfg['image_size'] // p) ** 2 + 1
    nar = cfg['num_aspect_ratios']
    bf16 = jnp.bfloat16

    keys = iter(jax.random.split(key, 128))

    def nrm(shape, s=0.02, dtype=jnp.float32):
        return (s * jax.random.normal(next(keys), shape, jnp.float32)).astype(dtype)

    def layer(gated):
        g = jnp.float32(jnp.pi / 4) if gated else jnp.float32(0.0)
        return dict(
            ln1_w=1.0 + nrm((D,)), ln1_b=nrm((D,)),
            # wq|wk|wv fused along the output axis; bias-free attention.
            wqkv=nrm((D, 3 * D), dtype=bf16), wo=nrm((D, D), dtype=bf16),
            ln2_w=1.0 + nrm((D,)), ln2_b=nrm((D,)),
            w1=nrm((D, Hd), dtype=bf16), b1=nrm((Hd,)),
            w2=nrm((Hd, D), dtype=bf16), b2=nrm((D,)),
            gate_attn=g, gate_ffn=g,
        )

    return dict(
        patch_w=nrm((C * p * p, D), dtype=bf16),   # Conv2d weight (C,kh,kw)->in, D out
        class_emb=nrm((D,)),
        norm1_w=1.0 + nrm((D,)), norm1_b=nrm((D,)),
        norm2_w=1.0 + nrm((D,)), norm2_b=nrm((D,)),
        pre_tile=dict(emb=nrm((nar, T * D)), gate=jnp.float32(0.5)),
        post_tile=dict(emb=nrm((nar, T * D)), gate=jnp.float32(0.5)),
        gated_pos=dict(emb=nrm((P, D)), tile_emb=nrm((nar, T * P * D)),
                       gate=jnp.float32(0.5)),
        encoder_layers=[layer(False) for _ in range(cfg['vision_encoder_num_layers'])],
        global_layers=[layer(True) for _ in range(cfg['global_encoder_num_layers'])],
    )


# ----------------------------------------------------------------------------
if __name__ == "__main__":
    cfg = dict(
        image_size=16, patch_size=8, max_num_tiles=1, num_channels=3,
        vision_embed_dim=32, vision_hidden_dim=64, vision_num_heads=4,
        vision_encoder_num_layers=2, global_encoder_num_layers=1,
        intermediate_layers_indices=[0, 1], norm_eps=1e-5,
        num_aspect_ratios=4, dtype=jnp.float32, device=None,
    )
    B, M = 2, 1
    T = cfg['max_num_tiles']

    root = jax.random.PRNGKey(0)
    kpix, kparams = jax.random.split(root)
    pixel_values = jax.random.normal(
        kpix, (B, M, T, cfg['num_channels'], cfg['image_size'], cfg['image_size']),
        jnp.float32)
    aspect_ratio_ids = jnp.ones((B, M), jnp.int32)
    aspect_ratio_mask = jnp.ones((B, M, T), jnp.float32)

    params = init_params(kparams, cfg)
    out = mllama3_vision_forward(params, pixel_values, aspect_ratio_ids,
                                 aspect_ratio_mask, cfg)
    jax.block_until_ready(out)
    assert out.shape == (B, M * T, (cfg['image_size'] // cfg['patch_size']) ** 2 + 1,
                         cfg['vision_embed_dim'] * (1 + len(cfg['intermediate_layers_indices'])))
    print("KERNEL_OK")
</pallas_src>

<mosaic_0001>
module attributes {stable_mosaic.version = 11 : i64} {
  func.func @_copy_probe_kernel(%arg0: i32, %arg1: memref<8x128xf32, #tpu.memory_space<vmem>>, %arg2: memref<8x128xf32, #tpu.memory_space<vmem>>) attributes {dimension_semantics = [#tpu.dimension_semantics<arbitrary>], iteration_bounds = array<i64: 2>, scalar_prefetch = 0 : i64, scratch_operands = 0 : i64, tpu.core_type = #tpu.core_type<tc>, window_params = [{pipeline_mode = #tpu.pipeline_mode<synchronous>, transform_indices = @transform_0, window_bounds = array<i64: 8, 128>}, {pipeline_mode = #tpu.pipeline_mode<synchronous>, transform_indices = @transform_1, window_bounds = array<i64: 8, 128>}]} {
    %c0 = arith.constant 0 : index
    %c0_0 = arith.constant 0 : index
    %0 = vector.load %arg1[%c0, %c0_0] : memref<8x128xf32, #tpu.memory_space<vmem>>, vector<8x128xf32>
    %c0_1 = arith.constant 0 : index
    %c0_2 = arith.constant 0 : index
    %1 = vector.load %arg2[%c0_1, %c0_2] : memref<8x128xf32, #tpu.memory_space<vmem>>, vector<8x128xf32>
    tpu.vector_store %arg2[%c0_1, %c0_2], %0 {strides = array<i32>} : memref<8x128xf32, #tpu.memory_space<vmem>>, vector<8x128xf32>,
    return
  }
  func.func @transform_0(%arg0: i32) -> (i32, i32) {
    %c0_i32 = arith.constant 0 : i32
    %c0_i32_0 = arith.constant 0 : i32
    %c0_i32_1 = arith.constant 0 : i32
    return %c0_i32, %c0_i32_0 : i32, i32
  }
  func.func @transform_1(%arg0: i32) -> (i32, i32) {
    %c0_i32 = arith.constant 0 : i32
    %c0_i32_0 = arith.constant 0 : i32
    %c0_i32_1 = arith.constant 0 : i32
    return %c0_i32, %c0_i32_0 : i32, i32
  }
}

module attributes {stable_mosaic.version = 11 : i64} {
  func.func @_rowmm_kernel(%arg0: i32, %arg1: memref<8x192xbf16, #tpu.memory_space<vmem>>, %arg2: memref<192x32xbf16, #tpu.memory_space<vmem>>, %arg3: memref<8x32xf32, #tpu.memory_space<vmem>>) attributes {dimension_semantics = [#tpu.dimension_semantics<parallel>], iteration_bounds = array<i64: 1>, scalar_prefetch = 0 : i64, scratch_operands = 0 : i64, tpu.core_type = #tpu.core_type<tc>, window_params = [{transform_indices = @transform_0, window_bounds = array<i64: 8, 192>}, {pipeline_mode = #tpu.pipeline_mode<synchronous>, transform_indices = @transform_1, window_bounds = array<i64: 192, 32>}, {transform_indices = @transform_2, window_bounds = array<i64: 8, 32>}]} {
    %c0 = arith.constant 0 : index
    %c0_0 = arith.constant 0 : index
    %0 = vector.load %arg1[%c0, %c0_0] : memref<8x192xbf16, #tpu.memory_space<vmem>>, vector<8x192xbf16>
    %c0_1 = arith.constant 0 : index
    %c0_2 = arith.constant 0 : index
    %1 = vector.load %arg2[%c0_1, %c0_2] : memref<192x32xbf16, #tpu.memory_space<vmem>>, vector<192x32xbf16>
    %cst = arith.constant dense<0.000000e+00> : vector<8x32xf32>
    %2 = tpu.matmul %0, %1, %cst {dimension_numbers = #tpu.dot_dimension_numbers<[1], [0], [0], [1], [0, 0, 1, 1], [], []>} : vector<8x192xbf16>, vector<192x32xbf16>, vector<8x32xf32> -> vector<8x32xf32>
    %c0_3 = arith.constant 0 : index
    %c0_4 = arith.constant 0 : index
    %3 = vector.load %arg3[%c0_3, %c0_4] : memref<8x32xf32, #tpu.memory_space<vmem>>, vector<8x32xf32>
    tpu.vector_store %arg3[%c0_3, %c0_4], %2 {strides = array<i32>} : memref<8x32xf32, #tpu.memory_space<vmem>>, vector<8x32xf32>,
    return
  }
  func.func @transform_0(%arg0: i32) -> (i32, i32) {
    %c0_i32 = arith.constant 0 : i32
    %c0_i32_0 = arith.constant 0 : i32
    return %arg0, %c0_i32 : i32, i32
  }
  func.func @transform_1(%arg0: i32) -> (i32, i32) {
    %c0_i32 = arith.constant 0 : i32
    %c0_i32_0 = arith.constant 0 : i32
    %c0_i32_1 = arith.constant 0 : i32
    return %c0_i32, %c0_i32_0 : i32, i32
  }
  func.func @transform_2(%arg0: i32) -> (i32, i32) {
    %c0_i32 = arith.constant 0 : i32
    %c0_i32_0 = arith.constant 0 : i32
    return %arg0, %c0_i32 : i32, i32
  }
}

</mosaic_0001>

<llo_original>
// kernel: tpu_custom_call.1
$region0: #{tpu_custom_call.1}
  #allocation0 [shape = 'u32[]', space=smem, size = 0x4, offset = 0x4, fixed_abs, tag = 'smem constant byte address 0x4 - core index']
  #allocation1 [shape = 'u32[72,128]{1,0:T(1,128)}', space=vmem, size = 0x9000, scoped, tag = 'internal scratch']
  %s0 = inlined_call_operand.hbm [shape: f32[8,128], index: 0, kind: input, shape index: {}]
  %s1 = inlined_call_operand.hbm [shape: f32[8,128], index: 1, kind: output, shape index: {}]
  %s2 = sld [smem:[#allocation0]]
  $region41: #{tpu_custom_call.1} parent=0
    _
  %s4 = ssub.s32 1, %s2
  %s5 = scalar_select 0, %s4, %s2
  $region1: #{tpu_custom_call.1} parent=0
    #allocation2 [shape = 'u8[4096]{0}', space=vmem, size = 0x1000, scoped, tag = 'input window, operand 0, single buffered']
    #allocation3 [shape = 's32[2]{0}', space=sflag, size = 0x8, scoped, tag = 'scoped memory for tpu_custom_call.1']
    #allocation4 [shape = 's32[2]{0}', space=sflag, size = 0x8, scoped, tag = 'scoped memory for tpu_custom_call.1']
    #allocation5 [shape = 'u8[4096]{0}', space=vmem, size = 0x1000, scoped, tag = 'output window, operand 0, single buffered']
    %6 = vsyncpa [#allocation3], 0
    %7 = vsyncpa [#allocation4], 0
    loop: start=0, step=1, limit=4
    $region2: #{tpu_custom_call.1} parent=1 // loop_pre_header
      _
    $region3: #{tpu_custom_call.1} parent=1 // loop_header
      %s9 = sphi 0, %s13
      %p10 = scmp.ge.s32.totalorder %s9, 4
      %s17 = sphi 0, %s17
      %s19 = sphi 0, %s17
      %s20 = sphi 0, %s19
      %s34 = sphi 0, %s20
      %s38 = sphi 0, %s38
      %s40 = sphi 0, %s38
      %s41 = sphi 0, %s40
      %s55 = sphi 0, %s41
    $region4: #{tpu_custom_call.1} parent=1 // loop_header_branch
      %12 = sbr.rel (%p10) target = $region8
    $region5: #{tpu_custom_call.1} parent=1 // loop_body
      %s14 = ssub.s32 %s9, 1
      %s15 = ssub.s32 %s9, 2
      %s16 = sadd.s32 %s9, 1
      %s18 = sadd.s32 %s17, 1
      %p21 = scmp.eq.s32.totalorder %s9, 1
      %p22 = scmp.ne.s32.totalorder %s17, %s19
      %p23 = scmp.eq.s32.totalorder %s9, 0
      %p24 = por %p22, %p23
      %p25 = scmp.ne.s32.totalorder %s17, %s19
      %p26 = scmp.eq.s32.totalorder %s14, 1
      %p27 = por %p25, %p26
      %p28 = scmp.ne.s32.totalorder %s19, %s20
      %p29 = scmp.eq.s32.totalorder %s14, 0
      %p30 = por %p28, %p29
      %p31 = scmp.ne.s32.totalorder %s19, %s20
      %p32 = scmp.eq.s32.totalorder %s15, 1
      %p33 = por %p31, %p32
      %p35 = scmp.ne.s32.totalorder %s20, %s34
      %p36 = scmp.eq.s32.totalorder %s15, 0
      %p37 = por %p35, %p36
      %s39 = sadd.s32 %s38, 1
      %p42 = scmp.eq.s32.totalorder %s9, 1
      %p43 = scmp.ne.s32.totalorder %s38, %s40
      %p44 = scmp.eq.s32.totalorder %s9, 0
      %p45 = por %p43, %p44
      %p46 = scmp.ne.s32.totalorder %s38, %s40
      %p47 = scmp.eq.s32.totalorder %s14, 1
      %p48 = por %p46, %p47
      %p49 = scmp.ne.s32.totalorder %s40, %s41
      %p50 = scmp.eq.s32.totalorder %s14, 0
      %p51 = por %p49, %p50
      %p52 = scmp.ne.s32.totalorder %s40, %s41
      %p53 = scmp.eq.s32.totalorder %s15, 1
      %p54 = por %p52, %p53
      %p56 = scmp.ne.s32.totalorder %s41, %s55
      %p57 = scmp.eq.s32.totalorder %s15, 0
      %p58 = por %p56, %p57
      %p59 = scmp.le.s32.totalorder 1, %s9
      %p60 = scmp.lt.s32.totalorder %s9, 3
      %p61 = pnand %p59, %p60
      %p62 = pneg %p61
      // Predicated region
      $region9: #{tpu_custom_call.1} parent=5 // pred_check
        _
      $region10: #{tpu_custom_call.1} parent=5 // pred_check_branch
        %64 = sbr.rel (%p61) target = $region12
      $region11: #{tpu_custom_call.1} parent=5 // pred_region
        %s65 = ssub.s32 %s9, 1
        // Predicated region
        $region13: #{tpu_custom_call.1} parent=11 // pred_check
          %p66 = pneg %p30
        $region14: #{tpu_custom_call.1} parent=11 // pred_check_branch
          %68 = sbr.rel (%p66) target = $region16
        $region15: #{tpu_custom_call.1} parent=11 // pred_region
          %70 = vsyncadd [#allocation3], 0
          %s72 = sshll.u32 %s0, 4
          %s73 = int_to_ptr.hbm [resolvable:$true] %s72
          %s74 = sshll.u32 [#allocation2], 4
          %s75 = int_to_ptr.vmem [resolvable:$true] %s74
          %77 = dma.hbm_to_vmem [thread:$0]  %s73, 128, %s75, [#allocation3]
        $region16: #{tpu_custom_call.1} parent=11 // pred_fallthru
          _
      $region12: #{tpu_custom_call.1} parent=5 // pred_fallthru
        _
      %p78 = scmp.lt.s32.totalorder %s9, 2
      // Predicated region
      $region17: #{tpu_custom_call.1} parent=5 // pred_check
        %p79 = pneg %p78
      $region18: #{tpu_custom_call.1} parent=5 // pred_check_branch
        %81 = sbr.rel (%p79) target = $region20
      $region19: #{tpu_custom_call.1} parent=5 // pred_region
        _
      $region20: #{tpu_custom_call.1} parent=5 // pred_fallthru
        _
      %p82 = scmp.le.s32.totalorder 1, %s9
      %p83 = scmp.lt.s32.totalorder %s9, 3
      %p84 = pnand %p82, %p83
      %p85 = pneg %p84
      // Predicated region
      $region21: #{tpu_custom_call.1} parent=5 // pred_check
        _
      $region22: #{tpu_custom_call.1} parent=5 // pred_check_branch
        %87 = sbr.rel (%p84) target = $region24
      $region23: #{tpu_custom_call.1} parent=5 // pred_region
        %s88 = ssub.s32 %s9, 1
        // Predicated region
        $region25: #{tpu_custom_call.1} parent=23 // pred_check
          %p89 = pneg %p30
        $region26: #{tpu_custom_call.1} parent=23 // pred_check_branch
          %91 = sbr.rel (%p89) target = $region28
        $region27: #{tpu_custom_call.1} parent=23 // pred_region
          %93 = dma.done [#allocation3], 128
        $region28: #{tpu_custom_call.1} parent=23 // pred_fallthru
          _
        %p94 = pneg %p30
        %p95 = pneg %p27
        %p96 = pneg %p51
        %p97 = pneg %p48
        %v98 = vld [vmem:[#allocation2] sm:$0xff]
        %99 = vst [vmem:[#allocation5] sm:$0xff] %v98
        // Predicated region
        $region29: #{tpu_custom_call.1} parent=23 // pred_check
          %p100 = pneg %p48
        $region30: #{tpu_custom_call.1} parent=23 // pred_check_branch
          %102 = sbr.rel (%p100) target = $region32
        $region31: #{tpu_custom_call.1} parent=23 // pred_region
          %104 = vsyncadd [#allocation4], 0
          %s106 = sshll.u32 [#allocation5], 4
          %s107 = int_to_ptr.vmem [resolvable:$true] %s106
          %s108 = sshll.u32 %s1, 4
          %s109 = int_to_ptr.hbm [resolvable:$true] %s108
          %111 = dma.vmem_to_hbm [thread:$0]  %s107, 128, %s109, [#allocation4]
        $region32: #{tpu_custom_call.1} parent=23 // pred_fallthru
          _
        // Predicated region
        $region33: #{tpu_custom_call.1} parent=23 // pred_check
          %p112 = pneg %p48
        $region34: #{tpu_custom_call.1} parent=23 // pred_check_branch
          %114 = sbr.rel (%p112) target = $region36
        $region35: #{tpu_custom_call.1} parent=23 // pred_region
          %116 = dma.done [#allocation4], 128
        $region36: #{tpu_custom_call.1} parent=23 // pred_fallthru
          _
      $region24: #{tpu_custom_call.1} parent=5 // pred_fallthru
        _
      %p117 = scmp.le.s32.totalorder 2, %s9
      // Predicated region
      $region37: #{tpu_custom_call.1} parent=5 // pred_check
        %p118 = pneg %p117
      $region38: #{tpu_custom_call.1} parent=5 // pred_check_branch
        %120 = sbr.rel (%p118) target = $region40
      $region39: #{tpu_custom_call.1} parent=5 // pred_region
        %s121 = ssub.s32 %s9, 2
      $region40: #{tpu_custom_call.1} parent=5 // pred_fallthru
        _
    $region6: #{tpu_custom_call.1} parent=1 // loop_footer
      %s13 = sadd.s32 1, %s9
    $region7: #{tpu_custom_call.1} parent=1 // loop_footer_branch
      %8 = sbr.rel target = $region3
    $region8: #{tpu_custom_call.1} parent=1 // loop_exit
      _
    %122 = vsyncpa [#allocation3], 1
    %s123 = scalar_lea.sflag [#allocation3], 1
    %124 = vsyncpa %s123, 1
    %125 = vsyncpa [#allocation4], 1
    %s126 = scalar_lea.sflag [#allocation4], 1
    %127 = vsyncpa %s126, 1

// kernel: tpu_custom_call.1
$region0: #{tpu_custom_call.1}
  #allocation0 [shape = 'u32[]', space=smem, size = 0x4, offset = 0x4, fixed_abs, tag = 'smem constant byte address 0x4 - core index']
  #allocation1 [shape = 'u32[72,128]{1,0:T(1,128)}', space=vmem, size = 0x9000, scoped, tag = 'internal scratch']
  %s0 = inlined_call_operand.vmem [shape: bf16[8,192], index: 0, kind: input, shape index: {}]
  %s1 = inlined_call_operand.vmem [shape: bf16[192,32], index: 1, kind: input, shape index: {}]
  %s2 = inlined_call_operand.hbm [shape: f32[8,32], index: 2, kind: output, shape index: {}]
  %s3 = sld [smem:[#allocation0]]
  $region18: #{tpu_custom_call.1} parent=0
    _
  %s5 = ssub.s32 1, %s3
  %s6 = scalar_select 0, %s5, %s3
  $region1: #{tpu_custom_call.1} parent=0
    #allocation2 [shape = 'u8[4096]{0}', space=vmem, size = 0x1000, scoped, tag = 'output window, operand 0, single buffered']
    #allocation3 [shape = 's32[1]{0}', space=sflag, size = 0x4, scoped, tag = 'scoped memory for tpu_custom_call.1']
    %7 = vsyncpa [#allocation3], 0
    // Predicated region
    $region2: #{tpu_custom_call.1} parent=1 // pred_check
      _
    $region3: #{tpu_custom_call.1} parent=1 // pred_check_branch
      %9 = sbr.rel (0) target = $region5
    $region4: #{tpu_custom_call.1} parent=1 // pred_region
      _
    $region5: #{tpu_custom_call.1} parent=1 // pred_fallthru
      _
    // Predicated region
    $region6: #{tpu_custom_call.1} parent=1 // pred_check
      _
    $region7: #{tpu_custom_call.1} parent=1 // pred_check_branch
      %11 = sbr.rel (0) target = $region9
    $region8: #{tpu_custom_call.1} parent=1 // pred_region
      _
    $region9: #{tpu_custom_call.1} parent=1 // pred_fallthru
      _
    %v13 = vld [vmem:[%s0] sm:$0xff]
    %v14 = vld [vmem:[%s1] sm:$0xf]
    %v15 = vld [vmem:[%s1 + $0x4] sm:$0xf]
    %v16 = vld [vmem:[%s1 + $0x8] sm:$0xf]
    %v17 = vld [vmem:[%s1 + $0xc] sm:$0xf]
    %v18 = vld [vmem:[%s1 + $0x10] sm:$0xf]
    %v19 = vld [vmem:[%s1 + $0x14] sm:$0xf]
    %v20 = vld [vmem:[%s1 + $0x18] sm:$0xf]
    %v21 = vld [vmem:[%s1 + $0x1c] sm:$0xf]
    %v22 = vld [vmem:[%s1 + $0x20] sm:$0xf]
    %v23 = vld [vmem:[%s1 + $0x24] sm:$0xf]
    %v24 = vld [vmem:[%s1 + $0x28] sm:$0xf]
    %v25 = vld [vmem:[%s1 + $0x2c] sm:$0xf]
    %v26 = vld [vmem:[%s1 + $0x30] sm:$0xf]
    %v27 = vld [vmem:[%s1 + $0x34] sm:$0xf]
    %v28 = vld [vmem:[%s1 + $0x38] sm:$0xf]
    %v29 = vld [vmem:[%s1 + $0x3c] sm:$0xf]
    %v30 = vld [vmem:[%s1 + $0x40] sm:$0xf]
    %v31 = vld [vmem:[%s1 + $0x44] sm:$0xf]
    %v32 = vld [vmem:[%s1 + $0x48] sm:$0xf]
    %v33 = vld [vmem:[%s1 + $0x4c] sm:$0xf]
    %v34 = vld [vmem:[%s1 + $0x50] sm:$0xf]
    %v35 = vld [vmem:[%s1 + $0x54] sm:$0xf]
    %v36 = vld [vmem:[%s1 + $0x58] sm:$0xf]
    %v37 = vld [vmem:[%s1 + $0x5c] sm:$0xf]
    %v39 = vunpack.c.l.b16 %v13
    %v40 = vunpack.c.h.b16 %v13
    %v41 = vpack.c.b16 %v39, %v39
    %v42 = vpack.c.b16 %v40, %v40
    %v68 = vunpack.c.l.b16 %v14
    %v69 = vunpack.c.l.b16 %v15
    %v70 = vunpack.c.l.b16 %v16
    %v71 = vunpack.c.l.b16 %v17
    %v72 = vunpack.c.l.b16 %v18
    %v73 = vunpack.c.l.b16 %v19
    %v74 = vunpack.c.l.b16 %v20
    %v75 = vunpack.c.l.b16 %v21
    %v76 = vunpack.c.l.b16 %v22
    %v77 = vunpack.c.l.b16 %v23
    %v78 = vunpack.c.l.b16 %v24
    %v79 = vunpack.c.l.b16 %v25
    %v80 = vunpack.c.l.b16 %v26
    %v81 = vunpack.c.l.b16 %v27
    %v82 = vunpack.c.l.b16 %v28
    %v83 = vunpack.c.l.b16 %v29
    %v84 = vunpack.c.l.b16 %v30
    %v85 = vunpack.c.l.b16 %v31
    %v86 = vunpack.c.l.b16 %v32
    %v87 = vunpack.c.l.b16 %v33
    %v88 = vunpack.c.l.b16 %v34
    %v89 = vunpack.c.l.b16 %v35
    %v90 = vunpack.c.l.b16 %v36
    %v91 = vunpack.c.l.b16 %v37
    %v92 = vpack.c.b16 %v69, %v68
    %v93 = vpack.c.b16 %v71, %v70
    %v94 = vpack.c.b16 %v73, %v72
    %v95 = vpack.c.b16 %v75, %v74
    %v96 = vpack.c.b16 %v77, %v76
    %v97 = vpack.c.b16 %v79, %v78
    %v98 = vpack.c.b16 %v81, %v80
    %v99 = vpack.c.b16 %v83, %v82
    %v100 = vpack.c.b16 %v85, %v84
    %v101 = vpack.c.b16 %v87, %v86
    %v102 = vpack.c.b16 %v89, %v88
    %v103 = vpack.c.b16 %v91, %v90
    %vm116 = vcmask 523264
    %v118 = vsel %vm116, %v42, 0
    %120 = vmatpush.bf16.msra.mxu0 %v99
    %121 = vmatpush.bf16.msra.mxu0 %v98
    %122 = vmatpush.bf16.msra.mxu0 %v97
    %123 = vmatpush.bf16.msra.mxu0 %v96
    %124 = vmatpush.bf16.msra.mxu0 %v95
    %125 = vmatpush.bf16.msra.mxu0 %v94
    %126 = vmatpush.bf16.msra.mxu0 %v93
    %127 = vmatpush.bf16.msra.mxu0 %v92
    %128 = vmatmul.bf16.gmra.mxu0 %v41
    %v129 = vpop.f32.mrf.mxu0
    %v130 = vadd.f32 0.0, %v129
    %v131 = vpop.f32.mrf.mxu0
    %132 = vdwg.mxu0
    %133 = vmatpush.bf16.msra.mxu0 0
    %134 = vmatpush.bf16.msra.mxu0 0
    %135 = vmatpush.bf16.msra.mxu0 0
    %136 = vmatpush.bf16.msra.mxu0 0
    %137 = vmatpush.bf16.msra.mxu0 %v103
    %138 = vmatpush.bf16.msra.mxu0 %v102
    %139 = vmatpush.bf16.msra.mxu0 %v101
    %140 = vmatpush.bf16.msra.mxu0 %v100
    %141 = vmatmul.bf16.gmra.mxu0 %v118
    %v142 = vpop.f32.mrf.mxu0
    %v143 = vadd.f32 %v130, %v142
    %v144 = vpop.f32.mrf.mxu0
    %145 = vdwg.mxu0
    %vm146 = vcmask 261120
    %147 = vst.msk [vmem:[#allocation2] sm:$0xff] %vm146, %v143
    // Predicated region
    $region10: #{tpu_custom_call.1} parent=1 // pred_check
      _
    $region11: #{tpu_custom_call.1} parent=1 // pred_check_branch
      %149 = sbr.rel (0) target = $region13
    $region12: #{tpu_custom_call.1} parent=1 // pred_region
      %151 = vsyncadd [#allocation3], 0
      %s153 = sshll.u32 [#allocation2], 4
      %s154 = int_to_ptr.vmem [resolvable:$true] %s153
      %s155 = sshll.u32 %s2, 4
      %s156 = int_to_ptr.hbm [resolvable:$true] %s155
      %158 = dma.vmem_to_hbm [thread:$0]  %s154, 128, %s156, [#allocation3]
    $region13: #{tpu_custom_call.1} parent=1 // pred_fallthru
      _
    // Predicated region
    $region14: #{tpu_custom_call.1} parent=1 // pred_check
      _
    $region15: #{tpu_custom_call.1} parent=1 // pred_check_branch
      %160 = sbr.rel (0) target = $region17
    $region16: #{tpu_custom_call.1} parent=1 // pred_region
      %162 = dma.done [#allocation3], 128
    $region17: #{tpu_custom_call.1} parent=1 // pred_fallthru
      _
    %163 = vsyncpa [#allocation3], 1

</llo_original>
